<compile_context>
chip_gen: v7x
topology: tpu7x:2x2x1
jax: 0.10.0
libtpu: 0.0.40
codegen_flags: <defaults>
</compile_context>

<pallas_src>
import functools

import jax
import jax.numpy as jnp
from jax.experimental import pallas as pl
from jax.experimental.pallas import tpu as pltpu

_EPS = 1e-6  # torch.nn.functional.pairwise_distance default eps


def _contrastive_loss_kernel(out1_ref, out2_ref, label_ref, partial_ref, *,
                             batch, tile, margin):
    i = pl.program_id(0)

    # Stream native dtype from HBM; compute in f32 vregs (free relative to DMA).
    x = out1_ref[...].astype(jnp.float32)                 # (TB, D)
    y = out2_ref[...].astype(jnp.float32)                 # (TB, D)
    lbl = label_ref[...].astype(jnp.float32)              # (TB, 1)

    diff = x - y + _EPS
    d2 = jnp.sum(diff * diff, axis=-1, keepdims=True)     # (TB, 1)
    d = jnp.sqrt(d2)
    hinge = jnp.maximum(margin - d, 0.0)
    # Keep d*d (square of the sqrt'd distance) for bit-parity with torch.
    per = (1.0 - lbl) * (d * d) + lbl * (hinge * hinge)   # (TB, 1)

    # Mask padded rows of a partial last tile before summing.
    row = i * tile + jax.lax.broadcasted_iota(jnp.int32, per.shape, 0)
    per = jnp.where(row < batch, per, 0.0)

    s = jnp.sum(per)                                      # per-tile partial sum

    # Single cheap masked write of the partial sum into element [0, 0] of this
    # tile's (8, 128) output block (zeros elsewhere), keeping the grid axis
    # "parallel"; the final mean is a trivial XLA reduce in the wrapper.
    r = jax.lax.broadcasted_iota(jnp.int32, (8, 128), 0)
    c = jax.lax.broadcasted_iota(jnp.int32, (8, 128), 1)
    partial_ref[...] = jnp.where((r == 0) & (c == 0), s, 0.0)


def _vmem_capacity_bytes():
    try:
        info = pltpu.get_tpu_info()
        cap = getattr(info, "vmem_capacity_bytes", None)
        if cap:
            return int(cap)
    except Exception:
        pass
    return 64 * 1024 * 1024  # conservative fallback (v7x per-TC VMEM)


def _vmem_budgets():
    """Generation-aware (tile_budget, vmem_limit) in bytes.

    128 MiB chips (v5e/v6e): limit 96 MiB, ~48 MiB of double-buffered tiles.
    64 MiB chips  (v7x)    : limit 48 MiB, ~36 MiB of double-buffered tiles.
    """
    cap = _vmem_capacity_bytes()
    vmem_limit = min((cap * 3) // 4, 96 * 1024 * 1024)
    tile_budget = min(48 * 1024 * 1024, (vmem_limit * 3) // 4)
    return tile_budget, vmem_limit


def _sublane_multiple(itemsize):
    # Packed-sublane multiple: 8 rows for 4-byte, 16 for 2-byte, 32 for 1-byte.
    return max(8, 32 // max(int(itemsize), 1))


def _choose_batch_tile(B, D, itemsize, sublane, tile_budget):
    # Bytes per batch row held in VMEM by the pipeline:
    #   2 inputs x 2 pipeline buffers x D x itemsize
    # + label tile, lane-padded to 128 lanes: 2 buffers x 128 x 4 B.
    per_row = 2 * 2 * D * itemsize + 2 * 128 * 4
    tb = tile_budget // max(per_row, 1)
    tb = max(sublane, (tb // sublane) * sublane)
    if B <= sublane:
        # Single full-extent tile (any B, incl. non-multiples of the sublane).
        return int(B)
    # Cap at ceil(B/2) rounded up to the sublane multiple so the "parallel"
    # grid axis always has >= 2 steps (both v7x TensorCores get a DMA stream).
    half = -(-B // 2)
    half = -(-half // sublane) * sublane
    return int(min(tb, half))


def contrastive_loss(out1, out2, label, margin=2.0, *, batch_tile=None):
    B, D = out1.shape
    assert out2.shape == (B, D)
    label = jnp.asarray(label).reshape(B, 1).astype(jnp.float32)

    itemsize = jnp.dtype(out1.dtype).itemsize
    sublane = _sublane_multiple(itemsize)
    tile_budget, vmem_limit = _vmem_budgets()

    if batch_tile is None:
        tb = _choose_batch_tile(B, D, itemsize, sublane, tile_budget)
    else:
        tb = int(batch_tile)
        if tb >= B:
            tb = B                                   # single full-extent tile
        else:
            # Keep the (tb, D) BlockSpec sublane-divisible for packed dtypes.
            tb = max(sublane, (tb // sublane) * sublane)

    num_tiles = pl.cdiv(B, tb)

    kernel = functools.partial(
        _contrastive_loss_kernel, batch=B, tile=tb, margin=float(margin))

    partials = pl.pallas_call(
        kernel,
        out_shape=jax.ShapeDtypeStruct((num_tiles * 8, 128), jnp.float32),
        grid_spec=pltpu.PrefetchScalarGridSpec(
            num_scalar_prefetch=0,
            grid=(num_tiles,),
            in_specs=[
                pl.BlockSpec((tb, D), lambda i: (i, 0)),
                pl.BlockSpec((tb, D), lambda i: (i, 0)),
                pl.BlockSpec((tb, 1), lambda i: (i, 0)),
            ],
            out_specs=pl.BlockSpec((8, 128), lambda i: (i, 0)),
        ),
        compiler_params=pltpu.CompilerParams(
            dimension_semantics=("parallel",),
            vmem_limit_bytes=int(vmem_limit),
        ),
    )(out1, out2, label)

    # Tiny finalize in XLA: sum of per-tile partial sums, divided by the true B.
    return jnp.sum(partials) / B


def _reference(out1, out2, label, margin=2.0):
    d = jnp.sqrt(jnp.sum(
        (out1.astype(jnp.float32) - out2.astype(jnp.float32) + _EPS) ** 2,
        axis=-1, keepdims=True))
    lbl = label.reshape(-1, 1).astype(jnp.float32)
    return jnp.mean((1.0 - lbl) * d**2 + lbl * jnp.maximum(margin - d, 0.0) ** 2)


if __name__ == "__main__":
    key = jax.random.PRNGKey(0)
    k1, k2, k3, k4, k5, k6, k7, k8, k9 = jax.random.split(key, 9)

    # 1) Small demo shapes consistent with the module (B feature-vector pairs).
    B, D = 8, 32
    out1 = jax.random.normal(k1, (B, D), dtype=jnp.float32)
    out2 = jax.random.normal(k2, (B, D), dtype=jnp.float32)
    label = jax.random.bernoulli(k3, 0.5, (B, 1)).astype(jnp.float32)

    loss = contrastive_loss(out1, out2, label)
    jax.block_until_ready(loss)
    ref = _reference(out1, out2, label)
    assert jnp.allclose(loss, ref, rtol=1e-5, atol=1e-5), (loss, ref)

    # 2) Explicit batch_tile: multi-tile grid + masked partial last tile.
    B2, D2 = 12, 32
    a = jax.random.normal(k4, (B2, D2), dtype=jnp.float32)
    b = jax.random.normal(k5, (B2, D2), dtype=jnp.float32)
    lbl2 = jax.random.bernoulli(k6, 0.5, (B2, 1)).astype(jnp.float32)
    loss2 = contrastive_loss(a, b, lbl2, batch_tile=8)
    jax.block_until_ready(loss2)
    ref2 = _reference(a, b, lbl2)
    assert jnp.allclose(loss2, ref2, rtol=1e-5, atol=1e-5), (loss2, ref2)

    # 3) bf16 streaming path + auto tile selection (16-row sublane packing,
    #    >=2 grid steps for megacore, masked partial second tile).
    B3, D3 = 24, 128
    a3 = jax.random.normal(k7, (B3, D3), dtype=jnp.bfloat16)
    b3 = jax.random.normal(k8, (B3, D3), dtype=jnp.bfloat16)
    lbl3 = jax.random.bernoulli(k9, 0.5, (B3, 1)).astype(jnp.float32)
    loss3 = contrastive_loss(a3, b3, lbl3)
    jax.block_until_ready(loss3)
    ref3 = _reference(a3, b3, lbl3)
    assert jnp.allclose(loss3, ref3, rtol=1e-4, atol=1e-4), (loss3, ref3)

    print("KERNEL_OK")
</pallas_src>

<mosaic_0001>
module attributes {stable_mosaic.version = 11 : i64} {
  func.func @_contrastive_loss_kernel(%arg0: i32, %arg1: memref<8x32xf32, #tpu.memory_space<vmem>>, %arg2: memref<8x32xf32, #tpu.memory_space<vmem>>, %arg3: memref<8x1xf32, #tpu.memory_space<vmem>>, %arg4: memref<8x128xf32, #tpu.memory_space<vmem>>) attributes {dimension_semantics = [#tpu.dimension_semantics<parallel>], iteration_bounds = array<i64: 1>, scalar_prefetch = 0 : i64, scratch_operands = 0 : i64, tpu.core_type = #tpu.core_type<tc>, window_params = [{transform_indices = @transform_0, window_bounds = array<i64: 8, 32>}, {transform_indices = @transform_1, window_bounds = array<i64: 8, 32>}, {transform_indices = @transform_2, window_bounds = array<i64: 8, 1>}, {transform_indices = @transform_3, window_bounds = array<i64: 8, 128>}]} {
    %c0 = arith.constant 0 : index
    %c0_0 = arith.constant 0 : index
    %0 = vector.load %arg1[%c0, %c0_0] : memref<8x32xf32, #tpu.memory_space<vmem>>, vector<8x32xf32>
    %c0_1 = arith.constant 0 : index
    %c0_2 = arith.constant 0 : index
    %1 = vector.load %arg2[%c0_1, %c0_2] : memref<8x32xf32, #tpu.memory_space<vmem>>, vector<8x32xf32>
    %c0_3 = arith.constant 0 : index
    %c0_4 = arith.constant 0 : index
    %2 = vector.load %arg3[%c0_3, %c0_4] : memref<8x1xf32, #tpu.memory_space<vmem>>, vector<8x1xf32>
    %3 = arith.subf %0, %1 : vector<8x32xf32>
    %cst = arith.constant 9.99999997E-7 : f32
    %4 = vector.broadcast %cst : f32 to vector<8x32xf32>
    %5 = arith.addf %3, %4 : vector<8x32xf32>
    %6 = arith.mulf %5, %5 : vector<8x32xf32>
    %cst_5 = arith.constant dense<0.000000e+00> : vector<8xf32>
    %7 = vector.multi_reduction <add>, %6, %cst_5 [1] : vector<8x32xf32> to vector<8xf32>
    %8 = vector.shape_cast %7 : vector<8xf32> to vector<8x1xf32>
    %9 = math.sqrt %8 : vector<8x1xf32>
    %cst_6 = arith.constant 2.000000e+00 : f32
    %10 = vector.broadcast %cst_6 : f32 to vector<8x1xf32>
    %11 = arith.subf %10, %9 : vector<8x1xf32>
    %cst_7 = arith.constant 0.000000e+00 : f32
    %12 = vector.broadcast %cst_7 : f32 to vector<8x1xf32>
    %13 = arith.maximumf %11, %12 : vector<8x1xf32>
    %cst_8 = arith.constant 1.000000e+00 : f32
    %14 = vector.broadcast %cst_8 : f32 to vector<8x1xf32>
    %15 = arith.subf %14, %2 : vector<8x1xf32>
    %16 = arith.mulf %9, %9 : vector<8x1xf32>
    %17 = arith.mulf %15, %16 : vector<8x1xf32>
    %18 = arith.mulf %13, %13 : vector<8x1xf32>
    %19 = arith.mulf %2, %18 : vector<8x1xf32>
    %20 = arith.addf %17, %19 : vector<8x1xf32>
    %c8_i32 = arith.constant 8 : i32
    %21 = arith.muli %arg0, %c8_i32 : i32
    %22 = tpu.iota {dimensions = array<i32: 0>} : vector<8x1xi32>
    %23 = vector.broadcast %21 : i32 to vector<8x1xi32>
    %24 = arith.addi %23, %22 : vector<8x1xi32>
    %c8_i32_9 = arith.constant 8 : i32
    %25 = vector.broadcast %c8_i32_9 : i32 to vector<8x1xi32>
    %26 = arith.cmpi slt, %24, %25 : vector<8x1xi32>
    %cst_10 = arith.constant 0.000000e+00 : f32
    %27 = vector.broadcast %cst_10 : f32 to vector<8x1xf32>
    %28 = arith.select %26, %20, %27 : vector<8x1xi1>, vector<8x1xf32>
    %29 = vector.shape_cast %28 : vector<8x1xf32> to vector<1x8x1xf32>
    %cst_11 = arith.constant dense<0.000000e+00> : vector<1xf32>
    %30 = vector.multi_reduction <add>, %29, %cst_11 [1, 2] : vector<1x8x1xf32> to vector<1xf32>
    %31 = vector.shape_cast %30 : vector<1xf32> to vector<1x1x1xf32>
    %32 = vector.extract %31[0, 0, 0] : f32 from vector<1x1x1xf32>
    %33 = tpu.iota {dimensions = array<i32: 0>} : vector<8x128xi32>
    %34 = tpu.iota {dimensions = array<i32: 1>} : vector<8x128xi32>
    %c0_i32 = arith.constant 0 : i32
    %35 = vector.broadcast %c0_i32 : i32 to vector<8x128xi32>
    %36 = arith.cmpi eq, %33, %35 : vector<8x128xi32>
    %c0_i32_12 = arith.constant 0 : i32
    %37 = vector.broadcast %c0_i32_12 : i32 to vector<8x128xi32>
    %38 = arith.cmpi eq, %34, %37 : vector<8x128xi32>
    %39 = arith.andi %36, %38 : vector<8x128xi1>
    %cst_13 = arith.constant 0.000000e+00 : f32
    %40 = vector.broadcast %32 : f32 to vector<8x128xf32>
    %41 = vector.broadcast %cst_13 : f32 to vector<8x128xf32>
    %42 = arith.select %39, %40, %41 : vector<8x128xi1>, vector<8x128xf32>
    %c0_14 = arith.constant 0 : index
    %c0_15 = arith.constant 0 : index
    %43 = vector.load %arg4[%c0_14, %c0_15] : memref<8x128xf32, #tpu.memory_space<vmem>>, vector<8x128xf32>
    tpu.vector_store %arg4[%c0_14, %c0_15], %42 {strides = array<i32>} : memref<8x128xf32, #tpu.memory_space<vmem>>, vector<8x128xf32>,
    return
  }
  func.func @transform_0(%arg0: i32) -> (i32, i32) {
    %c0_i32 = arith.constant 0 : i32
    %c0_i32_0 = arith.constant 0 : i32
    return %arg0, %c0_i32 : i32, i32
  }
  func.func @transform_1(%arg0: i32) -> (i32, i32) {
    %c0_i32 = arith.constant 0 : i32
    %c0_i32_0 = arith.constant 0 : i32
    return %arg0, %c0_i32 : i32, i32
  }
  func.func @transform_2(%arg0: i32) -> (i32, i32) {
    %c0_i32 = arith.constant 0 : i32
    %c0_i32_0 = arith.constant 0 : i32
    return %arg0, %c0_i32 : i32, i32
  }
  func.func @transform_3(%arg0: i32) -> (i32, i32) {
    %c0_i32 = arith.constant 0 : i32
    %c0_i32_0 = arith.constant 0 : i32
    return %arg0, %c0_i32 : i32, i32
  }
}

</mosaic_0001>

<llo_original>
// kernel: tpu_custom_call.1
$region0: #{tpu_custom_call.1}
  #allocation0 [shape = 'u32[]', space=smem, size = 0x4, offset = 0x4, fixed_abs, tag = 'smem constant byte address 0x4 - core index']
  #allocation1 [shape = 'u32[144,128]{1,0:T(1,128)}', space=vmem, size = 0x12000, scoped, tag = 'internal scratch']
  %s0 = inlined_call_operand.vmem [shape: f32[8,32], index: 0, kind: input, shape index: {}]
  %s1 = inlined_call_operand.hbm [shape: f32[8,32], index: 1, kind: input, shape index: {}]
  %s2 = inlined_call_operand.vmem [shape: f32[8,1], index: 2, kind: input, shape index: {}]
  %s3 = inlined_call_operand.hbm [shape: f32[8,128], index: 3, kind: output, shape index: {}]
  %s4 = sld [smem:[#allocation0]]
  $region26: #{tpu_custom_call.1} parent=0
    _
  %s6 = ssub.s32 1, %s4
  %s7 = scalar_select 0, %s6, %s4
  $region1: #{tpu_custom_call.1} parent=0
    #allocation2 [shape = 'u8[4096]{0}', space=vmem, size = 0x1000, scoped, tag = 'input window, operand 1, single buffered']
    #allocation3 [shape = 's32[1]{0}', space=sflag, size = 0x4, scoped, tag = 'scoped memory for tpu_custom_call.1']
    #allocation4 [shape = 's32[1]{0}', space=sflag, size = 0x4, scoped, tag = 'scoped memory for tpu_custom_call.1']
    #allocation5 [shape = 'u8[4096]{0}', space=vmem, size = 0x1000, scoped, tag = 'output window, operand 0, single buffered']
    %8 = vsyncpa [#allocation3], 0
    %9 = vsyncpa [#allocation4], 0
    // Predicated region
    $region2: #{tpu_custom_call.1} parent=1 // pred_check
      _
    $region3: #{tpu_custom_call.1} parent=1 // pred_check_branch
      %11 = sbr.rel (0) target = $region5
    $region4: #{tpu_custom_call.1} parent=1 // pred_region
      _
    $region5: #{tpu_custom_call.1} parent=1 // pred_fallthru
      _
    // Predicated region
    $region6: #{tpu_custom_call.1} parent=1 // pred_check
      _
    $region7: #{tpu_custom_call.1} parent=1 // pred_check_branch
      %13 = sbr.rel (0) target = $region9
    $region8: #{tpu_custom_call.1} parent=1 // pred_region
      %s15 = ssub.s32 128, 128
      %16 = vsyncadd [#allocation3], %s15
      %s18 = sshll.u32 [#allocation2], 4
      %s19 = int_to_ptr.vmem [resolvable:$true] %s18
      %21 = dma.hbm_to_vmem [thread:$0]  %s1, 128, %s19, [#allocation3]
    $region9: #{tpu_custom_call.1} parent=1 // pred_fallthru
      _
    // Predicated region
    $region10: #{tpu_custom_call.1} parent=1 // pred_check
      _
    $region11: #{tpu_custom_call.1} parent=1 // pred_check_branch
      %23 = sbr.rel (0) target = $region13
    $region12: #{tpu_custom_call.1} parent=1 // pred_region
      _
    $region13: #{tpu_custom_call.1} parent=1 // pred_fallthru
      _
    // Predicated region
    $region14: #{tpu_custom_call.1} parent=1 // pred_check
      _
    $region15: #{tpu_custom_call.1} parent=1 // pred_check_branch
      %25 = sbr.rel (0) target = $region17
    $region16: #{tpu_custom_call.1} parent=1 // pred_region
      %26 = dma.done [#allocation3], 128
    $region17: #{tpu_custom_call.1} parent=1 // pred_fallthru
      _
    %v27 = vld [vmem:[%s0] sm:$0xff]
    %v28 = vld [vmem:[#allocation2] sm:$0xff]
    %v29 = vld [vmem:[%s2] sm:$0xff]
    %v30 = vsub.f32 %v27, %v28
    %v31 = vadd.f32 %v30, 1e-06
    %v32 = vmul.f32 %v31, %v31
    %vm33 = vcmask 261120
    %v34 = vsel %vm33, %v32, 0.0
    %35 = vadd.xlane.f32.xlu0 %v34
    %v36 = vpop.xlane.xlu0 %35
    %v37 = vrsqrt.pop %v36
    %v38 = vmul.f32 %v36, %v37
    %vm39 = vcmp.eq.f32.partialorder %v36, inf
    %v40 = vsel %vm39, %v36, %v38
    %vm41 = vcmp.eq.f32.partialorder %v36, 0.0
    %v42 = vand.u32 %v36, 2147483648
    %v43 = vsel %vm41, %v42, %v40
    %v44 = vsub.f32 2.0, %v43
    %v45 = vmax.f32 %v44, 0.0
    %v46 = vsub.f32 1.0, %v29
    %v47 = vmul.f32 %v43, %v43
    %v48 = vmul.f32 %v46, %v47
    %v49 = vmul.f32 %v45, %v45
    %v50 = vmul.f32 %v29, %v49
    %v51 = vadd.f32 %v48, %v50
    %s52 = smul.u32 0, 8
    %v53 = vlaneseq
    %v54 = vshrl.u32 %v53, 7
    %v55 = vstv %s52
    %v56 = vadd.s32 %v55, %v54
    %vm57 = vcmp.lt.s32.totalorder %v56, 8
    %v58 = vsel %vm57, %v51, 0.0
    %vm59 = vcmask 7168
    %v60 = vsel %vm59, %v58, 0.0
    %61 = vadd.xlane.f32.xlu0 %v60
    %v62 = vpop.xlane.xlu0 %61
    %v63 = vrot.slane %v62, 4
    %v64 = vadd.f32 %v62, %v63
    %v65 = vrot.slane %v64, 2
    %v66 = vadd.f32 %v64, %v65
    %v67 = vrot.slane %v66, 1
    %v68 = vadd.f32 %v66, %v67
    %s69 = vtos %v68
    %v70 = vlaneseq
    %v71 = vand.u32 %v70, 127
    %vm72 = vcmp.eq.s32.totalorder %v54, 0
    %vm73 = vcmp.eq.s32.totalorder %v71, 0
    %vm74 = vmand %vm72, %vm73
    %v75 = vstv %s69
    %v76 = vsel %vm74, %v75, 0.0
    %77 = vst [vmem:[#allocation5] sm:$0xff] %v76
    // Predicated region
    $region18: #{tpu_custom_call.1} parent=1 // pred_check
      _
    $region19: #{tpu_custom_call.1} parent=1 // pred_check_branch
      %79 = sbr.rel (0) target = $region21
    $region20: #{tpu_custom_call.1} parent=1 // pred_region
      %s81 = ssub.s32 128, 128
      %82 = vsyncadd [#allocation4], %s81
      %s84 = sshll.u32 [#allocation5], 4
      %s85 = int_to_ptr.vmem [resolvable:$true] %s84
      %87 = dma.vmem_to_hbm [thread:$0]  %s85, 128, %s3, [#allocation4]
    $region21: #{tpu_custom_call.1} parent=1 // pred_fallthru
      _
    // Predicated region
    $region22: #{tpu_custom_call.1} parent=1 // pred_check
      _
    $region23: #{tpu_custom_call.1} parent=1 // pred_check_branch
      %89 = sbr.rel (0) target = $region25
    $region24: #{tpu_custom_call.1} parent=1 // pred_region
      %90 = dma.done [#allocation4], 128
    $region25: #{tpu_custom_call.1} parent=1 // pred_fallthru
      _
    %91 = vsyncpa [#allocation3], 1
    %92 = vsyncpa [#allocation4], 1

</llo_original>
